<compile_context>
chip_gen: v5e
topology: v5e:2x2
jax: 0.10.0
libtpu: 0.0.40
codegen_flags: <defaults>
</compile_context>

<pallas_src>
import jax
import jax.numpy as jnp
from jax.experimental import pallas as pl
from jax.experimental.pallas import tpu as pltpu


# ----------------------------------------------------------------------------- kernel
def mlp_kernel(x_ref, w1_ref, b1_ref, w2_ref, b2_ref, w3_ref, b3_ref, o_ref, h_ref):
    # Layer 1: x @ W1 + b1, ReLU  (MXU with f32 accumulation, f32 epilogue,
    # single cast when storing into the compute-dtype scratch).
    h_ref[...] = jnp.maximum(
        jnp.dot(x_ref[...], w1_ref[...], preferred_element_type=jnp.float32)
        + b1_ref[...],
        0.0,
    ).astype(h_ref.dtype)
    # Layer 2: h1 @ W2 + b2, ReLU  (scratch already in compute dtype -> no cast pass).
    h_ref[...] = jnp.maximum(
        jnp.dot(h_ref[...], w2_ref[...], preferred_element_type=jnp.float32)
        + b2_ref[...],
        0.0,
    ).astype(h_ref.dtype)
    # Layer 3: h2 @ W3 + b3  (no activation).
    o_ref[...] = (
        jnp.dot(h_ref[...], w3_ref[...], preferred_element_type=jnp.float32)
        + b3_ref[...]
    ).astype(o_ref.dtype)


# ----------------------------------------------------------------------------- helpers
def _round_up(n, m):
    return ((n + m - 1) // m) * m


def _physical_vmem_bytes():
    try:
        return int(pltpu.get_tpu_info().vmem_capacity_bytes)
    except Exception:
        return 64 << 20  # most conservative per-TC VMEM (v7x)


def _pick_batch_tile(B, F_pad, H_pad, C_pad, itemsize, out_itemsize,
                     max_tile, resident_bytes):
    """MXU-friendly batch tile sized against the real per-generation VMEM budget.

    Budget = physical VMEM - resident (single-buffered) weights/biases - margin.
    TB snaps to 256 for large B (v6e/v7x MXU height, multiple of v5e's 128),
    128 for medium B, round_up(B, 8) for tiny B.
    """
    phys = _physical_vmem_bytes()
    budget = max(4 << 20, phys - resident_bytes - (8 << 20))

    if B >= 256:
        tb = min(_round_up(B, 256), max(256, (max_tile // 256) * 256))
    elif B >= 128:
        tb = 128
    else:
        tb = min(_round_up(B, 8), _round_up(max_tile, 8))

    def tile_bytes(t):
        return (2 * t * F_pad * itemsize        # x tile (double-buffered)
                + 2 * t * C_pad * out_itemsize  # out tile (double-buffered)
                + t * H_pad * itemsize)         # hidden scratch (compute dtype)

    while tb > 8 and tile_bytes(tb) > budget:
        if tb > 256:
            tb -= 256
        elif tb > 128:
            tb = 128
        else:
            tb = max(8, _round_up(tb // 2, 8))

    # v7x has 2 TensorCores: for a large batch make sure there are >= 2 grid
    # steps to shard across them (free on v5e/v6e's single core).
    if B >= 256:
        while _round_up(B, tb) // tb < 2 and tb > 128:
            tb = max(128, ((tb // 2) // 128) * 128)

    return tb


def _vmem_need_bytes(TB, F_pad, H_pad, C_pad, itemsize, out_itemsize, resident_bytes):
    tiles = 2 * TB * F_pad * itemsize + 2 * TB * C_pad * out_itemsize
    scratch = TB * H_pad * itemsize
    return resident_bytes + tiles + scratch + (2 << 20)


def _vmem_limit_bytes(need, phys):
    # Never request more scoped VMEM than physically exists (v7x: 64 MiB/TC).
    return min(int(need * 1.25) + (4 << 20), phys)


# ----------------------------------------------------------------------------- params
def prepare_params(params, compute_dtype=jnp.bfloat16):
    """One-time glue: transpose PyTorch weights to [in, out], zero-pad all feature
    dims to multiples of 128 (lane-dense), cast to the compute dtype.
    Default bf16 = MXU-native on all generations; pass jnp.float32 for an
    exactness-checkable path."""
    w1, b1 = params["w1"], params["b1"]   # (H, F), (H,)
    w2, b2 = params["w2"], params["b2"]   # (H, H), (H,)
    w3, b3 = params["w3"], params["b3"]   # (C, H), (C,)
    H, F = w1.shape
    C = w3.shape[0]
    F_pad, H_pad, C_pad = (_round_up(d, 128) for d in (F, H, C))

    def pad2(a, rows, cols):
        return jnp.pad(a, ((0, rows - a.shape[0]), (0, cols - a.shape[1])))

    return {
        "w1": pad2(w1.T, F_pad, H_pad).astype(compute_dtype),
        "w2": pad2(w2.T, H_pad, H_pad).astype(compute_dtype),
        "w3": pad2(w3.T, H_pad, C_pad).astype(compute_dtype),
        "b1": jnp.pad(b1, (0, H_pad - H)).reshape(1, H_pad).astype(jnp.float32),
        "b2": jnp.pad(b2, (0, H_pad - H)).reshape(1, H_pad).astype(jnp.float32),
        "b3": jnp.pad(b3, (0, C_pad - C)).reshape(1, C_pad).astype(jnp.float32),
        "dims": (F, H, C),
        "compute_dtype": compute_dtype,
    }


# ----------------------------------------------------------------------------- wrapper
def advanced_neural_model(x, prepared, *, max_batch_tile=512):
    """x: [B, input_features]. prepared: output of prepare_params()."""
    F, H, C = prepared["dims"]
    w1, w2, w3 = prepared["w1"], prepared["w2"], prepared["w3"]
    b1, b2, b3 = prepared["b1"], prepared["b2"], prepared["b3"]
    F_pad, H_pad = w1.shape
    C_pad = w3.shape[1]
    cdt = prepared["compute_dtype"]
    itemsize = jnp.dtype(cdt).itemsize

    B = x.shape[0]
    out_dtype = x.dtype
    out_itemsize = jnp.dtype(out_dtype).itemsize

    # Single-buffered resident weights + f32 biases.
    resident_bytes = ((F_pad * H_pad + H_pad * H_pad + H_pad * C_pad) * itemsize
                      + (2 * H_pad + C_pad) * 4)

    TB = _pick_batch_tile(B, F_pad, H_pad, C_pad, itemsize, out_itemsize,
                          max_batch_tile, resident_bytes)
    B_pad = _round_up(B, TB)

    # Pad batch rows and feature lanes (zeros contribute exactly 0 downstream).
    x_p = jnp.pad(x, ((0, B_pad - B), (0, F_pad - F))).astype(cdt)

    def resident(shape):
        # Constant index_map -> no re-fetch across grid steps -> one buffer suffices.
        return pl.BlockSpec(shape, lambda i: (0,) * len(shape),
                            pipeline_mode=pl.Buffered(1))

    compiler_kwargs = dict(dimension_semantics=("parallel",))
    phys = _physical_vmem_bytes()
    need = _vmem_need_bytes(TB, F_pad, H_pad, C_pad, itemsize, out_itemsize,
                            resident_bytes)
    if need > (16 << 20):   # only raise the limit past the smallest default (v5e)
        compiler_kwargs["vmem_limit_bytes"] = _vmem_limit_bytes(need, phys)

    out = pl.pallas_call(
        mlp_kernel,
        out_shape=jax.ShapeDtypeStruct((B_pad, C_pad), out_dtype),
        grid=(B_pad // TB,),
        in_specs=[
            pl.BlockSpec((TB, F_pad), lambda i: (i, 0)),      # x tile, pipelined
            resident((F_pad, H_pad)), resident((1, H_pad)),   # W1, b1 (VMEM-resident)
            resident((H_pad, H_pad)), resident((1, H_pad)),   # W2, b2
            resident((H_pad, C_pad)), resident((1, C_pad)),   # W3, b3
        ],
        out_specs=pl.BlockSpec((TB, C_pad), lambda i: (i, 0)),     # lane-dense store
        scratch_shapes=[pltpu.VMEM((TB, H_pad), cdt)],             # h1/h2 scratch
        compiler_params=pltpu.CompilerParams(**compiler_kwargs),
    )(x_p, w1, b1, w2, b2, w3, b3)

    return out[:B, :C]


# ----------------------------------------------------------------------------- init / reference
def init_params(key, input_features, hidden_units, output_classes):
    """Deterministic init mirroring nn.Linear shapes (Kaiming-uniform-ish)."""
    ks = jax.random.split(key, 6)

    def linear(kw, kb, fan_in, fan_out):
        bound = 1.0 / jnp.sqrt(fan_in)
        w = jax.random.uniform(kw, (fan_out, fan_in), jnp.float32, -bound, bound)
        b = jax.random.uniform(kb, (fan_out,), jnp.float32, -bound, bound)
        return w, b

    w1, b1 = linear(ks[0], ks[1], input_features, hidden_units)
    w2, b2 = linear(ks[2], ks[3], hidden_units, hidden_units)
    w3, b3 = linear(ks[4], ks[5], hidden_units, output_classes)
    return {"w1": w1, "b1": b1, "w2": w2, "b2": b2, "w3": w3, "b3": b3}


def reference(x, p):
    h = jnp.maximum(x @ p["w1"].T + p["b1"], 0.0)
    h = jnp.maximum(h @ p["w2"].T + p["b2"], 0.0)
    return h @ p["w3"].T + p["b3"]


if __name__ == "__main__":
    key = jax.random.PRNGKey(0)
    k_x, k_p = jax.random.split(key)

    batch, input_features, hidden_units, output_classes = 8, 16, 32, 10
    x = jax.random.normal(k_x, (batch, input_features), jnp.float32)
    params = init_params(k_p, input_features, hidden_units, output_classes)

    # One-time param prep (hoisted out of the per-call path).
    prepared_bf16 = prepare_params(params)                               # perf default
    prepared_f32 = prepare_params(params, compute_dtype=jnp.float32)     # exactness check

    fwd_bf16 = jax.jit(lambda xx: advanced_neural_model(xx, prepared_bf16))
    fwd_f32 = jax.jit(lambda xx: advanced_neural_model(xx, prepared_f32))

    out_bf16 = jax.block_until_ready(fwd_bf16(x))
    out_f32 = jax.block_until_ready(fwd_f32(x))

    ref = reference(x, params)
    assert out_bf16.shape == (batch, output_classes)
    assert out_f32.shape == (batch, output_classes)
    # f32 path must match the reference tightly; bf16 path within bf16 tolerance.
    assert jnp.allclose(out_f32, ref, atol=1e-5, rtol=1e-5)
    assert jnp.allclose(out_bf16, ref, atol=5e-2, rtol=5e-2)

    print("KERNEL_OK")
</pallas_src>

<mosaic_0001>
module attributes {stable_mosaic.version = 11 : i64} {
  func.func @mlp_kernel(%arg0: i32, %arg1: memref<8x128xbf16, #tpu.memory_space<vmem>>, %arg2: memref<128x128xbf16, #tpu.memory_space<vmem>>, %arg3: memref<1x128xf32, #tpu.memory_space<vmem>>, %arg4: memref<128x128xbf16, #tpu.memory_space<vmem>>, %arg5: memref<1x128xf32, #tpu.memory_space<vmem>>, %arg6: memref<128x128xbf16, #tpu.memory_space<vmem>>, %arg7: memref<1x128xf32, #tpu.memory_space<vmem>>, %arg8: memref<8x128xf32, #tpu.memory_space<vmem>>, %arg9: memref<8x128xbf16, #tpu.memory_space<vmem>>) attributes {dimension_semantics = [#tpu.dimension_semantics<parallel>], iteration_bounds = array<i64: 1>, scalar_prefetch = 0 : i64, scratch_operands = 1 : i64, tpu.core_type = #tpu.core_type<tc>, window_params = [{transform_indices = @transform_0, window_bounds = array<i64: 8, 128>}, {pipeline_mode = #tpu.pipeline_mode<synchronous>, transform_indices = @transform_1, window_bounds = array<i64: 128, 128>}, {pipeline_mode = #tpu.pipeline_mode<synchronous>, transform_indices = @transform_2, window_bounds = array<i64: 1, 128>}, {pipeline_mode = #tpu.pipeline_mode<synchronous>, transform_indices = @transform_3, window_bounds = array<i64: 128, 128>}, {pipeline_mode = #tpu.pipeline_mode<synchronous>, transform_indices = @transform_4, window_bounds = array<i64: 1, 128>}, {pipeline_mode = #tpu.pipeline_mode<synchronous>, transform_indices = @transform_5, window_bounds = array<i64: 128, 128>}, {pipeline_mode = #tpu.pipeline_mode<synchronous>, transform_indices = @transform_6, window_bounds = array<i64: 1, 128>}, {transform_indices = @transform_7, window_bounds = array<i64: 8, 128>}]} {
    %c0 = arith.constant 0 : index
    %c0_0 = arith.constant 0 : index
    %0 = vector.load %arg1[%c0, %c0_0] : memref<8x128xbf16, #tpu.memory_space<vmem>>, vector<8x128xbf16>
    %c0_1 = arith.constant 0 : index
    %c0_2 = arith.constant 0 : index
    %1 = vector.load %arg2[%c0_1, %c0_2] : memref<128x128xbf16, #tpu.memory_space<vmem>>, vector<128x128xbf16>
    %cst = arith.constant dense<0.000000e+00> : vector<8x128xf32>
    %2 = tpu.matmul %0, %1, %cst {dimension_numbers = #tpu.dot_dimension_numbers<[1], [0], [0], [1], [0, 0, 1, 1], [], []>} : vector<8x128xbf16>, vector<128x128xbf16>, vector<8x128xf32> -> vector<8x128xf32>
    %c0_3 = arith.constant 0 : index
    %c0_4 = arith.constant 0 : index
    %3 = vector.load %arg3[%c0_3, %c0_4] : memref<1x128xf32, #tpu.memory_space<vmem>>, vector<1x128xf32>
    %4 = vector.broadcast %3 : vector<1x128xf32> to vector<8x128xf32>
    %5 = arith.addf %2, %4 : vector<8x128xf32>
    %cst_5 = arith.constant 0.000000e+00 : f32
    %6 = vector.broadcast %cst_5 : f32 to vector<8x128xf32>
    %7 = arith.maximumf %5, %6 : vector<8x128xf32>
    %8 = arith.truncf %7 : vector<8x128xf32> to vector<8x128xbf16>
    %c0_6 = arith.constant 0 : index
    %c0_7 = arith.constant 0 : index
    %9 = vector.load %arg9[%c0_6, %c0_7] : memref<8x128xbf16, #tpu.memory_space<vmem>>, vector<8x128xbf16>
    tpu.vector_store %arg9[%c0_6, %c0_7], %8 {strides = array<i32>} : memref<8x128xbf16, #tpu.memory_space<vmem>>, vector<8x128xbf16>,
    %c0_8 = arith.constant 0 : index
    %c0_9 = arith.constant 0 : index
    %10 = vector.load %arg9[%c0_8, %c0_9] : memref<8x128xbf16, #tpu.memory_space<vmem>>, vector<8x128xbf16>
    %c0_10 = arith.constant 0 : index
    %c0_11 = arith.constant 0 : index
    %11 = vector.load %arg4[%c0_10, %c0_11] : memref<128x128xbf16, #tpu.memory_space<vmem>>, vector<128x128xbf16>
    %cst_12 = arith.constant dense<0.000000e+00> : vector<8x128xf32>
    %12 = tpu.matmul %10, %11, %cst_12 {dimension_numbers = #tpu.dot_dimension_numbers<[1], [0], [0], [1], [0, 0, 1, 1], [], []>} : vector<8x128xbf16>, vector<128x128xbf16>, vector<8x128xf32> -> vector<8x128xf32>
    %c0_13 = arith.constant 0 : index
    %c0_14 = arith.constant 0 : index
    %13 = vector.load %arg5[%c0_13, %c0_14] : memref<1x128xf32, #tpu.memory_space<vmem>>, vector<1x128xf32>
    %14 = vector.broadcast %13 : vector<1x128xf32> to vector<8x128xf32>
    %15 = arith.addf %12, %14 : vector<8x128xf32>
    %cst_15 = arith.constant 0.000000e+00 : f32
    %16 = vector.broadcast %cst_15 : f32 to vector<8x128xf32>
    %17 = arith.maximumf %15, %16 : vector<8x128xf32>
    %18 = arith.truncf %17 : vector<8x128xf32> to vector<8x128xbf16>
    %c0_16 = arith.constant 0 : index
    %c0_17 = arith.constant 0 : index
    %19 = vector.load %arg9[%c0_16, %c0_17] : memref<8x128xbf16, #tpu.memory_space<vmem>>, vector<8x128xbf16>
    tpu.vector_store %arg9[%c0_16, %c0_17], %18 {strides = array<i32>} : memref<8x128xbf16, #tpu.memory_space<vmem>>, vector<8x128xbf16>,
    %c0_18 = arith.constant 0 : index
    %c0_19 = arith.constant 0 : index
    %20 = vector.load %arg9[%c0_18, %c0_19] : memref<8x128xbf16, #tpu.memory_space<vmem>>, vector<8x128xbf16>
    %c0_20 = arith.constant 0 : index
    %c0_21 = arith.constant 0 : index
    %21 = vector.load %arg6[%c0_20, %c0_21] : memref<128x128xbf16, #tpu.memory_space<vmem>>, vector<128x128xbf16>
    %cst_22 = arith.constant dense<0.000000e+00> : vector<8x128xf32>
    %22 = tpu.matmul %20, %21, %cst_22 {dimension_numbers = #tpu.dot_dimension_numbers<[1], [0], [0], [1], [0, 0, 1, 1], [], []>} : vector<8x128xbf16>, vector<128x128xbf16>, vector<8x128xf32> -> vector<8x128xf32>
    %c0_23 = arith.constant 0 : index
    %c0_24 = arith.constant 0 : index
    %23 = vector.load %arg7[%c0_23, %c0_24] : memref<1x128xf32, #tpu.memory_space<vmem>>, vector<1x128xf32>
    %24 = vector.broadcast %23 : vector<1x128xf32> to vector<8x128xf32>
    %25 = arith.addf %22, %24 : vector<8x128xf32>
    %c0_25 = arith.constant 0 : index
    %c0_26 = arith.constant 0 : index
    %26 = vector.load %arg8[%c0_25, %c0_26] : memref<8x128xf32, #tpu.memory_space<vmem>>, vector<8x128xf32>
    tpu.vector_store %arg8[%c0_25, %c0_26], %25 {strides = array<i32>} : memref<8x128xf32, #tpu.memory_space<vmem>>, vector<8x128xf32>,
    return
  }
  func.func @transform_0(%arg0: i32) -> (i32, i32) {
    %c0_i32 = arith.constant 0 : i32
    %c0_i32_0 = arith.constant 0 : i32
    return %arg0, %c0_i32 : i32, i32
  }
  func.func @transform_1(%arg0: i32) -> (i32, i32) {
    %c0_i32 = arith.constant 0 : i32
    %c0_i32_0 = arith.constant 0 : i32
    %c0_i32_1 = arith.constant 0 : i32
    return %c0_i32, %c0_i32_0 : i32, i32
  }
  func.func @transform_2(%arg0: i32) -> (i32, i32) {
    %c0_i32 = arith.constant 0 : i32
    %c0_i32_0 = arith.constant 0 : i32
    %c0_i32_1 = arith.constant 0 : i32
    return %c0_i32, %c0_i32_0 : i32, i32
  }
  func.func @transform_3(%arg0: i32) -> (i32, i32) {
    %c0_i32 = arith.constant 0 : i32
    %c0_i32_0 = arith.constant 0 : i32
    %c0_i32_1 = arith.constant 0 : i32
    return %c0_i32, %c0_i32_0 : i32, i32
  }
  func.func @transform_4(%arg0: i32) -> (i32, i32) {
    %c0_i32 = arith.constant 0 : i32
    %c0_i32_0 = arith.constant 0 : i32
    %c0_i32_1 = arith.constant 0 : i32
    return %c0_i32, %c0_i32_0 : i32, i32
  }
  func.func @transform_5(%arg0: i32) -> (i32, i32) {
    %c0_i32 = arith.constant 0 : i32
    %c0_i32_0 = arith.constant 0 : i32
    %c0_i32_1 = arith.constant 0 : i32
    return %c0_i32, %c0_i32_0 : i32, i32
  }
  func.func @transform_6(%arg0: i32) -> (i32, i32) {
    %c0_i32 = arith.constant 0 : i32
    %c0_i32_0 = arith.constant 0 : i32
    %c0_i32_1 = arith.constant 0 : i32
    return %c0_i32, %c0_i32_0 : i32, i32
  }
  func.func @transform_7(%arg0: i32) -> (i32, i32) {
    %c0_i32 = arith.constant 0 : i32
    %c0_i32_0 = arith.constant 0 : i32
    return %arg0, %c0_i32 : i32, i32
  }
}

</mosaic_0001>

<llo_original>
// kernel: _lambda_.1
$region0: #{_lambda_.1}
  #allocation0 [shape = 'u32[]', space=smem, size = 0x4, offset = 0x4, fixed_abs, tag = 'smem constant byte address 0x4 - core index']
  #allocation1 [shape = 'u32[72,128]{1,0:T(1,128)}', space=vmem, size = 0x9000, scoped, tag = 'internal scratch']
  #allocation2 [shape = 'bf16[8,128]{1,0:T(8,128)(2,1)}', space=vmem, size = 0x800, scoped, tag = 'scratch operand']
  %s0 = inlined_call_operand.vmem [shape: bf16[8,128], index: 0, kind: input, shape index: {}]
  %s1 = inlined_call_operand.hbm [shape: bf16[128,128], index: 1, kind: input, shape index: {}]
  %s2 = inlined_call_operand.vmem [shape: f32[1,128], index: 2, kind: input, shape index: {}]
  %s3 = inlined_call_operand.hbm [shape: bf16[128,128], index: 3, kind: input, shape index: {}]
  %s4 = inlined_call_operand.vmem [shape: f32[1,128], index: 4, kind: input, shape index: {}]
  %s5 = inlined_call_operand.hbm [shape: bf16[128,128], index: 5, kind: input, shape index: {}]
  %s6 = inlined_call_operand.vmem [shape: f32[1,128], index: 6, kind: input, shape index: {}]
  %s7 = inlined_call_operand.hbm [shape: f32[8,128], index: 7, kind: output, shape index: {}]
  %s8 = sld [smem:[#allocation0]]
  $region50: #{_lambda_.1} parent=0
    _
  %s10 = ssub.s32 1, %s8
  %s11 = scalar_select 0, %s10, %s8
  $region1: #{_lambda_.1} parent=0
    #allocation3 [shape = 'u8[32768]{0}', space=vmem, size = 0x8000, scoped, tag = 'input window, operand 1, single buffered']
    #allocation4 [shape = 's32[1]{0}', space=sflag, size = 0x4, scoped, tag = 'scoped memory for _lambda_.1']
    #allocation5 [shape = 's32[1]{0}', space=sflag, size = 0x4, scoped, tag = 'scoped memory for _lambda_.1']
    #allocation6 [shape = 'u8[32768]{0}', space=vmem, size = 0x8000, scoped, tag = 'input window, operand 3, single buffered']
    #allocation7 [shape = 's32[1]{0}', space=sflag, size = 0x4, scoped, tag = 'scoped memory for _lambda_.1']
    #allocation8 [shape = 'u8[32768]{0}', space=vmem, size = 0x8000, scoped, tag = 'input window, operand 5, single buffered']
    #allocation9 [shape = 'u8[4096]{0}', space=vmem, size = 0x1000, scoped, tag = 'output window, operand 0, single buffered']
    %12 = vsyncpa [#allocation4], 0
    %13 = vsyncpa [#allocation7], 0
    %14 = vsyncpa [#allocation5], 0
    // Predicated region
    $region2: #{_lambda_.1} parent=1 // pred_check
      _
    $region3: #{_lambda_.1} parent=1 // pred_check_branch
      %16 = sbr.rel (0) target = $region5
    $region4: #{_lambda_.1} parent=1 // pred_region
      _
    $region5: #{_lambda_.1} parent=1 // pred_fallthru
      _
    // Predicated region
    $region6: #{_lambda_.1} parent=1 // pred_check
      _
    $region7: #{_lambda_.1} parent=1 // pred_check_branch
      %18 = sbr.rel (0) target = $region9
    $region8: #{_lambda_.1} parent=1 // pred_region
      %20 = vsyncadd [#allocation4], 0
      %s21 = sshll.u32 %s1, 4
      %s22 = int_to_ptr.hbm [resolvable:$true] %s21
      %s23 = sshll.u32 [#allocation3], 4
      %s24 = int_to_ptr.vmem [resolvable:$true] %s23
      %29 = dma.hbm_to_vmem [thread:$0]  %s22, 1024, %s24, [#allocation4], 64, 64, 4
    $region9: #{_lambda_.1} parent=1 // pred_fallthru
      _
    // Predicated region
    $region10: #{_lambda_.1} parent=1 // pred_check
      _
    $region11: #{_lambda_.1} parent=1 // pred_check_branch
      %31 = sbr.rel (0) target = $region13
    $region12: #{_lambda_.1} parent=1 // pred_region
      _
    $region13: #{_lambda_.1} parent=1 // pred_fallthru
      _
    // Predicated region
    $region14: #{_lambda_.1} parent=1 // pred_check
      _
    $region15: #{_lambda_.1} parent=1 // pred_check_branch
      %33 = sbr.rel (0) target = $region17
    $region16: #{_lambda_.1} parent=1 // pred_region
      %35 = vsyncadd [#allocation7], 0
      %s36 = sshll.u32 %s3, 4
      %s37 = int_to_ptr.hbm [resolvable:$true] %s36
      %s38 = sshll.u32 [#allocation6], 4
      %s39 = int_to_ptr.vmem [resolvable:$true] %s38
      %44 = dma.hbm_to_vmem [thread:$0]  %s37, 1024, %s39, [#allocation7], 64, 64, 4
    $region17: #{_lambda_.1} parent=1 // pred_fallthru
      _
    // Predicated region
    $region18: #{_lambda_.1} parent=1 // pred_check
      _
    $region19: #{_lambda_.1} parent=1 // pred_check_branch
      %46 = sbr.rel (0) target = $region21
    $region20: #{_lambda_.1} parent=1 // pred_region
      _
    $region21: #{_lambda_.1} parent=1 // pred_fallthru
      _
    // Predicated region
    $region22: #{_lambda_.1} parent=1 // pred_check
      _
    $region23: #{_lambda_.1} parent=1 // pred_check_branch
      %48 = sbr.rel (0) target = $region25
    $region24: #{_lambda_.1} parent=1 // pred_region
      %50 = vsyncadd [#allocation7], 0
      %s51 = sshll.u32 %s5, 4
      %s52 = int_to_ptr.hbm [resolvable:$true] %s51
      %s53 = sshll.u32 [#allocation8], 4
      %s54 = int_to_ptr.vmem [resolvable:$true] %s53
      %59 = dma.hbm_to_vmem [thread:$0]  %s52, 1024, %s54, [#allocation7], 64, 64, 4
    $region25: #{_lambda_.1} parent=1 // pred_fallthru
      _
    // Predicated region
    $region26: #{_lambda_.1} parent=1 // pred_check
      _
    $region27: #{_lambda_.1} parent=1 // pred_check_branch
      %61 = sbr.rel (0) target = $region29
    $region28: #{_lambda_.1} parent=1 // pred_region
      _
    $region29: #{_lambda_.1} parent=1 // pred_fallthru
      _
    // Predicated region
    $region30: #{_lambda_.1} parent=1 // pred_check
      _
    $region31: #{_lambda_.1} parent=1 // pred_check_branch
      %63 = sbr.rel (0) target = $region33
    $region32: #{_lambda_.1} parent=1 // pred_region
      %65 = dma.done [#allocation4], 1024
    $region33: #{_lambda_.1} parent=1 // pred_fallthru
      _
    // Predicated region
    $region34: #{_lambda_.1} parent=1 // pred_check
      _
    $region35: #{_lambda_.1} parent=1 // pred_check_branch
      %67 = sbr.rel (0) target = $region37
    $region36: #{_lambda_.1} parent=1 // pred_region
      %69 = dma.done [#allocation7], 1024
    $region37: #{_lambda_.1} parent=1 // pred_fallthru
      _
    // Predicated region
    $region38: #{_lambda_.1} parent=1 // pred_check
      _
    $region39: #{_lambda_.1} parent=1 // pred_check_branch
      %71 = sbr.rel (0) target = $region41
    $region40: #{_lambda_.1} parent=1 // pred_region
      %73 = dma.done [#allocation7], 1024
    $region41: #{_lambda_.1} parent=1 // pred_fallthru
      _
    %v74 = vld [vmem:[%s0] sm:$0xf]
    %v75 = vld [vmem:[#allocation3] sm:$0xf]
    %v76 = vld [vmem:[#allocation3 + $0x4] sm:$0xf]
    %v77 = vld [vmem:[#allocation3 + $0x8] sm:$0xf]
    %v78 = vld [vmem:[#allocation3 + $0xc] sm:$0xf]
    %v79 = vld [vmem:[#allocation3 + $0x10] sm:$0xf]
    %v80 = vld [vmem:[#allocation3 + $0x14] sm:$0xf]
    %v81 = vld [vmem:[#allocation3 + $0x18] sm:$0xf]
    %v82 = vld [vmem:[#allocation3 + $0x1c] sm:$0xf]
    %v83 = vld [vmem:[#allocation3 + $0x20] sm:$0xf]
    %v84 = vld [vmem:[#allocation3 + $0x24] sm:$0xf]
    %v85 = vld [vmem:[#allocation3 + $0x28] sm:$0xf]
    %v86 = vld [vmem:[#allocation3 + $0x2c] sm:$0xf]
    %v87 = vld [vmem:[#allocation3 + $0x30] sm:$0xf]
    %v88 = vld [vmem:[#allocation3 + $0x34] sm:$0xf]
    %v89 = vld [vmem:[#allocation3 + $0x38] sm:$0xf]
    %v90 = vld [vmem:[#allocation3 + $0x3c] sm:$0xf]
    %v91 = vld [vmem:[%s2] sm:$0x1]
    %v93 = vperm.slane %v91, 0
    %v111 = vunpack.c.l.b16 %v75
    %v112 = vunpack.c.l.b16 %v76
    %v113 = vunpack.c.l.b16 %v77
    %v114 = vunpack.c.l.b16 %v78
    %v115 = vunpack.c.l.b16 %v79
    %v116 = vunpack.c.l.b16 %v80
    %v117 = vunpack.c.l.b16 %v81
    %v118 = vunpack.c.l.b16 %v82
    %v119 = vunpack.c.l.b16 %v83
    %v120 = vunpack.c.l.b16 %v84
    %v121 = vunpack.c.l.b16 %v85
    %v122 = vunpack.c.l.b16 %v86
    %v123 = vunpack.c.l.b16 %v87
    %v124 = vunpack.c.l.b16 %v88
    %v125 = vunpack.c.l.b16 %v89
    %v126 = vunpack.c.l.b16 %v90
    %v127 = vpack.c.b16 %v112, %v111
    %v128 = vpack.c.b16 %v114, %v113
    %v129 = vpack.c.b16 %v116, %v115
    %v130 = vpack.c.b16 %v118, %v117
    %v131 = vpack.c.b16 %v120, %v119
    %v132 = vpack.c.b16 %v122, %v121
    %v133 = vpack.c.b16 %v124, %v123
    %v134 = vpack.c.b16 %v126, %v125
    %143 = vmatpush.bf16.msra.mxu0 %v134
    %144 = vmatpush.bf16.msra.mxu0 %v133
    %145 = vmatpush.bf16.msra.mxu0 %v132
    %146 = vmatpush.bf16.msra.mxu0 %v131
    %147 = vmatpush.bf16.msra.mxu0 %v130
    %148 = vmatpush.bf16.msra.mxu0 %v129
    %149 = vmatpush.bf16.msra.mxu0 %v128
    %150 = vmatpush.bf16.msra.mxu0 %v127
    %151 = vmatmul.bf16.gmra.mxu0 %v74
    %v152 = vpop.f32.mrf.mxu0
    %v153 = vadd.f32 %v93, %v152
    %v154 = vpop.f32.mrf.mxu0
    %155 = vdwg.mxu0
    %v156 = vmax.f32 %v153, 0.0
    %v157 = vpack.c.bf16 %v156, %v156
    %158 = vst [vmem:[#allocation2] sm:$0xf] %v157
    %v159 = vld [vmem:[#allocation2] sm:$0xf]
    %v160 = vld [vmem:[#allocation6] sm:$0xf]
    %v161 = vld [vmem:[#allocation6 + $0x4] sm:$0xf]
    %v162 = vld [vmem:[#allocation6 + $0x8] sm:$0xf]
    %v163 = vld [vmem:[#allocation6 + $0xc] sm:$0xf]
    %v164 = vld [vmem:[#allocation6 + $0x10] sm:$0xf]
    %v165 = vld [vmem:[#allocation6 + $0x14] sm:$0xf]
    %v166 = vld [vmem:[#allocation6 + $0x18] sm:$0xf]
    %v167 = vld [vmem:[#allocation6 + $0x1c] sm:$0xf]
    %v168 = vld [vmem:[#allocation6 + $0x20] sm:$0xf]
    %v169 = vld [vmem:[#allocation6 + $0x24] sm:$0xf]
    %v170 = vld [vmem:[#allocation6 + $0x28] sm:$0xf]
    %v171 = vld [vmem:[#allocation6 + $0x2c] sm:$0xf]
    %v172 = vld [vmem:[#allocation6 + $0x30] sm:$0xf]
    %v173 = vld [vmem:[#allocation6 + $0x34] sm:$0xf]
    %v174 = vld [vmem:[#allocation6 + $0x38] sm:$0xf]
    %v175 = vld [vmem:[#allocation6 + $0x3c] sm:$0xf]
    %v176 = vld [vmem:[%s4] sm:$0x1]
    %v178 = vperm.slane %v176, 0
    %v196 = vunpack.c.l.b16 %v160
    %v197 = vunpack.c.l.b16 %v161
    %v198 = vunpack.c.l.b16 %v162
    %v199 = vunpack.c.l.b16 %v163
    %v200 = vunpack.c.l.b16 %v164
    %v201 = vunpack.c.l.b16 %v165
    %v202 = vunpack.c.l.b16 %v166
    %v203 = vunpack.c.l.b16 %v167
    %v204 = vunpack.c.l.b16 %v168
    %v205 = vunpack.c.l.b16 %v169
    %v206 = vunpack.c.l.b16 %v170
    %v207 = vunpack.c.l.b16 %v171
    %v208 = vunpack.c.l.b16 %v172
    %v209 = vunpack.c.l.b16 %v173
    %v210 = vunpack.c.l.b16 %v174
    %v211 = vunpack.c.l.b16 %v175
    %v212 = vpack.c.b16 %v197, %v196
    %v213 = vpack.c.b16 %v199, %v198
    %v214 = vpack.c.b16 %v201, %v200
    %v215 = vpack.c.b16 %v203, %v202
    %v216 = vpack.c.b16 %v205, %v204
    %v217 = vpack.c.b16 %v207, %v206
    %v218 = vpack.c.b16 %v209, %v208
    %v219 = vpack.c.b16 %v211, %v210
    %228 = vmatpush.bf16.msra.mxu0 %v219
    %229 = vmatpush.bf16.msra.mxu0 %v218
    %230 = vmatpush.bf16.msra.mxu0 %v217
    %231 = vmatpush.bf16.msra.mxu0 %v216
    %232 = vmatpush.bf16.msra.mxu0 %v215
    %233 = vmatpush.bf16.msra.mxu0 %v214
    %234 = vmatpush.bf16.msra.mxu0 %v213
    %235 = vmatpush.bf16.msra.mxu0 %v212
    %236 = vmatmul.bf16.gmra.mxu0 %v159
    %v237 = vpop.f32.mrf.mxu0
    %v238 = vadd.f32 %v178, %v237
    %v239 = vpop.f32.mrf.mxu0
    %240 = vdwg.mxu0
    %v241 = vmax.f32 %v238, 0.0
    %v242 = vpack.c.bf16 %v241, %v241
    %243 = vst [vmem:[#allocation2] sm:$0xf] %v242
    %v244 = vld [vmem:[#allocation2] sm:$0xf]
    %v245 = vld [vmem:[#allocation8] sm:$0xf]
    %v246 = vld [vmem:[#allocation8 + $0x4] sm:$0xf]
    %v247 = vld [vmem:[#allocation8 + $0x8] sm:$0xf]
    %v248 = vld [vmem:[#allocation8 + $0xc] sm:$0xf]
    %v249 = vld [vmem:[#allocation8 + $0x10] sm:$0xf]
    %v250 = vld [vmem:[#allocation8 + $0x14] sm:$0xf]
    %v251 = vld [vmem:[#allocation8 + $0x18] sm:$0xf]
    %v252 = vld [vmem:[#allocation8 + $0x1c] sm:$0xf]
    %v253 = vld [vmem:[#allocation8 + $0x20] sm:$0xf]
    %v254 = vld [vmem:[#allocation8 + $0x24] sm:$0xf]
    %v255 = vld [vmem:[#allocation8 + $0x28] sm:$0xf]
    %v256 = vld [vmem:[#allocation8 + $0x2c] sm:$0xf]
    %v257 = vld [vmem:[#allocation8 + $0x30] sm:$0xf]
    %v258 = vld [vmem:[#allocation8 + $0x34] sm:$0xf]
    %v259 = vld [vmem:[#allocation8 + $0x38] sm:$0xf]
    %v260 = vld [vmem:[#allocation8 + $0x3c] sm:$0xf]
    %v261 = vld [vmem:[%s6] sm:$0x1]
    %v263 = vperm.slane %v261, 0
    %v281 = vunpack.c.l.b16 %v245
    %v282 = vunpack.c.l.b16 %v246
    %v283 = vunpack.c.l.b16 %v247
    %v284 = vunpack.c.l.b16 %v248
    %v285 = vunpack.c.l.b16 %v249
    %v286 = vunpack.c.l.b16 %v250
    %v287 = vunpack.c.l.b16 %v251
    %v288 = vunpack.c.l.b16 %v252
    %v289 = vunpack.c.l.b16 %v253
    %v290 = vunpack.c.l.b16 %v254
    %v291 = vunpack.c.l.b16 %v255
    %v292 = vunpack.c.l.b16 %v256
    %v293 = vunpack.c.l.b16 %v257
    %v294 = vunpack.c.l.b16 %v258
    %v295 = vunpack.c.l.b16 %v259
    %v296 = vunpack.c.l.b16 %v260
    %v297 = vpack.c.b16 %v282, %v281
    %v298 = vpack.c.b16 %v284, %v283
    %v299 = vpack.c.b16 %v286, %v285
    %v300 = vpack.c.b16 %v288, %v287
    %v301 = vpack.c.b16 %v290, %v289
    %v302 = vpack.c.b16 %v292, %v291
    %v303 = vpack.c.b16 %v294, %v293
    %v304 = vpack.c.b16 %v296, %v295
    %313 = vmatpush.bf16.msra.mxu0 %v304
    %314 = vmatpush.bf16.msra.mxu0 %v303
    %315 = vmatpush.bf16.msra.mxu0 %v302
    %316 = vmatpush.bf16.msra.mxu0 %v301
    %317 = vmatpush.bf16.msra.mxu0 %v300
    %318 = vmatpush.bf16.msra.mxu0 %v299
    %319 = vmatpush.bf16.msra.mxu0 %v298
    %320 = vmatpush.bf16.msra.mxu0 %v297
    %321 = vmatmul.bf16.gmra.mxu0 %v244
    %v322 = vpop.f32.mrf.mxu0
    %v323 = vadd.f32 %v263, %v322
    %v324 = vpop.f32.mrf.mxu0
    %325 = vdwg.mxu0
    %326 = vst [vmem:[#allocation9] sm:$0xff] %v323
    // Predicated region
    $region42: #{_lambda_.1} parent=1 // pred_check
      _
    $region43: #{_lambda_.1} parent=1 // pred_check_branch
      %328 = sbr.rel (0) target = $region45
    $region44: #{_lambda_.1} parent=1 // pred_region
      %330 = vsyncadd [#allocation5], 0
      %s332 = sshll.u32 [#allocation9], 4
      %s333 = int_to_ptr.vmem [resolvable:$true] %s332
      %s334 = sshll.u32 %s7, 4
      %s335 = int_to_ptr.hbm [resolvable:$true] %s334
      %337 = dma.vmem_to_hbm [thread:$0]  %s333, 128, %s335, [#allocation5]
    $region45: #{_lambda_.1} parent=1 // pred_fallthru
      _
    // Predicated region
    $region46: #{_lambda_.1} parent=1 // pred_check
      _
    $region47: #{_lambda_.1} parent=1 // pred_check_branch
      %339 = sbr.rel (0) target = $region49
    $region48: #{_lambda_.1} parent=1 // pred_region
      %341 = dma.done [#allocation5], 128
    $region49: #{_lambda_.1} parent=1 // pred_fallthru
      _
    %342 = vsyncpa [#allocation4], 1
    %343 = vsyncpa [#allocation7], 1
    %344 = vsyncpa [#allocation5], 1

</llo_original>
